<compile_context>
chip_gen: v7x
topology: tpu7x:2x2x1
jax: 0.10.0
libtpu: 0.0.40
codegen_flags: <defaults>
</compile_context>

<pallas_src>
import functools

import jax
import jax.numpy as jnp
from jax.experimental import pallas as pl
from jax.experimental.pallas import tpu as pltpu


LANE = 128
SUBLANE = 8


def _round_up(x, m):
    return ((x + m - 1) // m) * m


def diffusion_kernel(x_ref, t_ref,
                     w1_ref, b1_ref, w2_ref, b2_ref,
                     w3e_ref, w3t_ref, b3_ref, w4_ref, b4_ref,
                     out_ref):
    dot = functools.partial(jnp.dot, preferred_element_type=jnp.float32)

    # ---- encoder: Linear -> ReLU -> Linear (f32 accumulation on the MXU) ----
    h1 = dot(x_ref[...], w1_ref[...]) + b1_ref[...]
    h1 = jnp.maximum(h1, 0.0)
    enc = dot(h1.astype(w2_ref.dtype), w2_ref[...]) + b2_ref[...]

    # ---- decoder first layer, concat-free ----
    # [enc, t*ones(H)] @ w3  ==  enc @ w3[:H]  +  t * sum(w3[H:], axis=0)
    h2 = dot(enc.astype(w3e_ref.dtype), w3e_ref[...])
    h2 = h2 + t_ref[...] * w3t_ref[...] + b3_ref[...]      # rank-1 t term (VPU)
    h2 = jnp.maximum(h2, 0.0)

    # ---- decoder second layer ----
    out = dot(h2.astype(w4_ref.dtype), w4_ref[...]) + b4_ref[...]
    out_ref[...] = out.astype(out_ref.dtype)


def diffusion_forward(x, t, params, *, compute_dtype=jnp.bfloat16, batch_tile=512):
    """x: (B, D) f32, t: (B,), params: dict of (in,out)-layout weights."""
    B, D = x.shape
    H = params["w1"].shape[1]

    Dp = _round_up(D, LANE)   # lane-dense feature dims
    Hp = _round_up(H, LANE)

    def pad2(a, rows, cols):
        a = a.reshape((1, -1)) if a.ndim == 1 else a
        return jnp.pad(a, ((0, rows - a.shape[0]), (0, cols - a.shape[1])))

    # Zero-padded weights (zeros guarantee padded lanes never leak into D/H).
    w3 = params["w3"]                                     # (2H, H)
    w1 = pad2(params["w1"], Dp, Hp).astype(compute_dtype)
    w2 = pad2(params["w2"], Hp, Hp).astype(compute_dtype)
    w3e = pad2(w3[:H, :], Hp, Hp).astype(compute_dtype)
    w3t = pad2(w3[H:, :].sum(axis=0, keepdims=True), 1, Hp)          # f32
    w4 = pad2(params["w4"], Hp, Dp).astype(compute_dtype)
    b1 = pad2(params["b1"], 1, Hp)                                    # f32 biases
    b2 = pad2(params["b2"], 1, Hp)
    b3 = pad2(params["b3"], 1, Hp)
    b4 = pad2(params["b4"], 1, Dp)

    # Batch tiling: TB multiple of 8 sublanes; pad B up so the grid is uniform.
    # (TB=512 keeps per-step VMEM tiny even on v7x's 64 MiB.)
    TB = min(_round_up(batch_tile, SUBLANE), _round_up(B, SUBLANE))
    Bp = _round_up(B, TB)
    xp = pad2(x, Bp, Dp).astype(compute_dtype)
    tp = pad2(t.reshape(B, 1).astype(jnp.float32), Bp, 1)
    grid = (Bp // TB,)

    def resident(a):  # weights/biases stay in VMEM across all grid steps
        return pl.BlockSpec(a.shape, lambda i: (0, 0))

    in_specs = [
        pl.BlockSpec((TB, Dp), lambda i: (i, 0)),   # x tile
        pl.BlockSpec((TB, 1), lambda i: (i, 0)),    # t tile
        resident(w1), resident(b1), resident(w2), resident(b2),
        resident(w3e), resident(w3t), resident(b3),
        resident(w4), resident(b4),
    ]
    out_specs = pl.BlockSpec((TB, Dp), lambda i: (i, 0))

    itemsize = jnp.dtype(compute_dtype).itemsize
    weight_bytes = sum(int(a.size) * int(a.dtype.itemsize)
                       for a in (w1, b1, w2, b2, w3e, w3t, b3, w4, b4))
    cost = pl.CostEstimate(
        flops=2 * Bp * (Dp * Hp + Hp * Hp + Hp * Hp + Hp * Dp),
        transcendentals=0,
        bytes_accessed=Bp * Dp * itemsize + Bp * Dp * 4 + Bp * 4 + weight_bytes,
    )

    out_padded = pl.pallas_call(
        diffusion_kernel,
        out_shape=jax.ShapeDtypeStruct((Bp, Dp), jnp.float32),
        grid=grid,
        in_specs=in_specs,
        out_specs=out_specs,
        compiler_params=pltpu.CompilerParams(
            dimension_semantics=("parallel",)),     # megacore-shard batch axis
        cost_estimate=cost,
    )(xp, tp, w1, b1, w2, b2, w3e, w3t, b3, w4, b4)

    return out_padded[:B, :D]


def init_params(key, input_dim, hidden_dim):
    """nn.Linear-style init; weights stored pre-transposed as (in, out)."""
    def linear(k, fan_in, fan_out):
        kw, kb = jax.random.split(k)
        bound = 1.0 / jnp.sqrt(fan_in)
        w = jax.random.uniform(kw, (fan_in, fan_out), jnp.float32, -bound, bound)
        b = jax.random.uniform(kb, (1, fan_out), jnp.float32, -bound, bound)
        return w, b

    k1, k2, k3, k4 = jax.random.split(key, 4)
    w1, b1 = linear(k1, input_dim, hidden_dim)        # encoder Linear 1
    w2, b2 = linear(k2, hidden_dim, hidden_dim)       # encoder Linear 2
    w3, b3 = linear(k3, 2 * hidden_dim, hidden_dim)   # decoder Linear 1
    w4, b4 = linear(k4, hidden_dim, input_dim)        # decoder Linear 2
    return dict(w1=w1, b1=b1, w2=w2, b2=b2, w3=w3, b3=b3, w4=w4, b4=b4)


def reference_forward(x, t, p):
    """Pure-JAX reference of the PyTorch forward (with the concat)."""
    h1 = jnp.maximum(x @ p["w1"] + p["b1"], 0.0)
    enc = h1 @ p["w2"] + p["b2"]
    t_exp = jnp.broadcast_to(t.reshape(-1, 1).astype(jnp.float32), enc.shape)
    comb = jnp.concatenate((enc, t_exp), axis=1)
    h2 = jnp.maximum(comb @ p["w3"] + p["b3"], 0.0)
    return h2 @ p["w4"] + p["b4"]


if __name__ == "__main__":
    batch, input_dim, hidden_dim, n_steps = 8, 56, 128, 20

    key = jax.random.PRNGKey(0)
    kx, kt, kp = jax.random.split(key, 3)
    x = jax.random.normal(kx, (batch, input_dim), jnp.float32)
    t = jax.random.randint(kt, (batch,), 0, n_steps).astype(jnp.float32)
    params = init_params(kp, input_dim, hidden_dim)

    ref = reference_forward(x, t, params)

    # f32 operands: matches the module's f32 semantics closely.
    out_f32 = jax.block_until_ready(
        diffusion_forward(x, t, params, compute_dtype=jnp.float32))
    assert out_f32.shape == (batch, input_dim)
    assert jnp.allclose(out_f32, ref, atol=1e-3, rtol=1e-3), "f32 mismatch vs reference"

    # bf16 operands (production setting; f32 accumulation): within bf16 precision.
    out_bf16 = jax.block_until_ready(
        diffusion_forward(x, t, params, compute_dtype=jnp.bfloat16))
    rel_err = jnp.max(jnp.abs(out_bf16 - ref)) / (jnp.max(jnp.abs(ref)) + 1e-6)
    assert rel_err < 5e-2, f"bf16 rel err too large: {rel_err}"

    # Exercise the batch grid (>1 step) and ragged-batch zero padding.
    B2 = 40
    x2 = jax.random.normal(jax.random.PRNGKey(1), (B2, input_dim), jnp.float32)
    t2 = jnp.arange(B2, dtype=jnp.float32) % n_steps
    out2 = jax.block_until_ready(
        diffusion_forward(x2, t2, params, compute_dtype=jnp.float32, batch_tile=16))
    ref2 = reference_forward(x2, t2, params)
    assert jnp.allclose(out2, ref2, atol=1e-3, rtol=1e-3), "tiled-batch mismatch"

    print("KERNEL_OK")
</pallas_src>

<mosaic_0001>
module attributes {stable_mosaic.version = 11 : i64} {
  func.func @diffusion_kernel(%arg0: i32, %arg1: memref<8x128xf32, #tpu.memory_space<vmem>>, %arg2: memref<8x1xf32, #tpu.memory_space<vmem>>, %arg3: memref<128x128xf32, #tpu.memory_space<vmem>>, %arg4: memref<1x128xf32, #tpu.memory_space<vmem>>, %arg5: memref<128x128xf32, #tpu.memory_space<vmem>>, %arg6: memref<1x128xf32, #tpu.memory_space<vmem>>, %arg7: memref<128x128xf32, #tpu.memory_space<vmem>>, %arg8: memref<1x128xf32, #tpu.memory_space<vmem>>, %arg9: memref<1x128xf32, #tpu.memory_space<vmem>>, %arg10: memref<128x128xf32, #tpu.memory_space<vmem>>, %arg11: memref<1x128xf32, #tpu.memory_space<vmem>>, %arg12: memref<8x128xf32, #tpu.memory_space<vmem>>) attributes {dimension_semantics = [#tpu.dimension_semantics<parallel>], iteration_bounds = array<i64: 1>, scalar_prefetch = 0 : i64, scratch_operands = 0 : i64, tpu.core_type = #tpu.core_type<tc>, window_params = [{transform_indices = @transform_0, window_bounds = array<i64: 8, 128>}, {transform_indices = @transform_1, window_bounds = array<i64: 8, 1>}, {pipeline_mode = #tpu.pipeline_mode<synchronous>, transform_indices = @transform_2, window_bounds = array<i64: 128, 128>}, {pipeline_mode = #tpu.pipeline_mode<synchronous>, transform_indices = @transform_3, window_bounds = array<i64: 1, 128>}, {pipeline_mode = #tpu.pipeline_mode<synchronous>, transform_indices = @transform_4, window_bounds = array<i64: 128, 128>}, {pipeline_mode = #tpu.pipeline_mode<synchronous>, transform_indices = @transform_5, window_bounds = array<i64: 1, 128>}, {pipeline_mode = #tpu.pipeline_mode<synchronous>, transform_indices = @transform_6, window_bounds = array<i64: 128, 128>}, {pipeline_mode = #tpu.pipeline_mode<synchronous>, transform_indices = @transform_7, window_bounds = array<i64: 1, 128>}, {pipeline_mode = #tpu.pipeline_mode<synchronous>, transform_indices = @transform_8, window_bounds = array<i64: 1, 128>}, {pipeline_mode = #tpu.pipeline_mode<synchronous>, transform_indices = @transform_9, window_bounds = array<i64: 128, 128>}, {pipeline_mode = #tpu.pipeline_mode<synchronous>, transform_indices = @transform_10, window_bounds = array<i64: 1, 128>}, {transform_indices = @transform_11, window_bounds = array<i64: 8, 128>}]} {
    %c0 = arith.constant 0 : index
    %c0_0 = arith.constant 0 : index
    %0 = vector.load %arg1[%c0, %c0_0] : memref<8x128xf32, #tpu.memory_space<vmem>>, vector<8x128xf32>
    %c0_1 = arith.constant 0 : index
    %c0_2 = arith.constant 0 : index
    %1 = vector.load %arg3[%c0_1, %c0_2] : memref<128x128xf32, #tpu.memory_space<vmem>>, vector<128x128xf32>
    %cst = arith.constant dense<0.000000e+00> : vector<8x128xf32>
    %2 = tpu.matmul %0, %1, %cst {dimension_numbers = #tpu.dot_dimension_numbers<[1], [0], [0], [1], [0, 0, 1, 1], [], []>} : vector<8x128xf32>, vector<128x128xf32>, vector<8x128xf32> -> vector<8x128xf32>
    %c0_3 = arith.constant 0 : index
    %c0_4 = arith.constant 0 : index
    %3 = vector.load %arg4[%c0_3, %c0_4] : memref<1x128xf32, #tpu.memory_space<vmem>>, vector<1x128xf32>
    %4 = vector.broadcast %3 : vector<1x128xf32> to vector<8x128xf32>
    %5 = arith.addf %2, %4 : vector<8x128xf32>
    %cst_5 = arith.constant 0.000000e+00 : f32
    %6 = vector.broadcast %cst_5 : f32 to vector<8x128xf32>
    %7 = arith.maximumf %5, %6 : vector<8x128xf32>
    %c0_6 = arith.constant 0 : index
    %c0_7 = arith.constant 0 : index
    %8 = vector.load %arg5[%c0_6, %c0_7] : memref<128x128xf32, #tpu.memory_space<vmem>>, vector<128x128xf32>
    %cst_8 = arith.constant dense<0.000000e+00> : vector<8x128xf32>
    %9 = tpu.matmul %7, %8, %cst_8 {dimension_numbers = #tpu.dot_dimension_numbers<[1], [0], [0], [1], [0, 0, 1, 1], [], []>} : vector<8x128xf32>, vector<128x128xf32>, vector<8x128xf32> -> vector<8x128xf32>
    %c0_9 = arith.constant 0 : index
    %c0_10 = arith.constant 0 : index
    %10 = vector.load %arg6[%c0_9, %c0_10] : memref<1x128xf32, #tpu.memory_space<vmem>>, vector<1x128xf32>
    %11 = vector.broadcast %10 : vector<1x128xf32> to vector<8x128xf32>
    %12 = arith.addf %9, %11 : vector<8x128xf32>
    %c0_11 = arith.constant 0 : index
    %c0_12 = arith.constant 0 : index
    %13 = vector.load %arg7[%c0_11, %c0_12] : memref<128x128xf32, #tpu.memory_space<vmem>>, vector<128x128xf32>
    %cst_13 = arith.constant dense<0.000000e+00> : vector<8x128xf32>
    %14 = tpu.matmul %12, %13, %cst_13 {dimension_numbers = #tpu.dot_dimension_numbers<[1], [0], [0], [1], [0, 0, 1, 1], [], []>} : vector<8x128xf32>, vector<128x128xf32>, vector<8x128xf32> -> vector<8x128xf32>
    %c0_14 = arith.constant 0 : index
    %c0_15 = arith.constant 0 : index
    %15 = vector.load %arg2[%c0_14, %c0_15] : memref<8x1xf32, #tpu.memory_space<vmem>>, vector<8x1xf32>
    %c0_16 = arith.constant 0 : index
    %c0_17 = arith.constant 0 : index
    %16 = vector.load %arg8[%c0_16, %c0_17] : memref<1x128xf32, #tpu.memory_space<vmem>>, vector<1x128xf32>
    %17 = vector.broadcast %15 : vector<8x1xf32> to vector<8x128xf32>
    %18 = vector.broadcast %16 : vector<1x128xf32> to vector<8x128xf32>
    %19 = arith.mulf %17, %18 : vector<8x128xf32>
    %20 = arith.addf %14, %19 : vector<8x128xf32>
    %c0_18 = arith.constant 0 : index
    %c0_19 = arith.constant 0 : index
    %21 = vector.load %arg9[%c0_18, %c0_19] : memref<1x128xf32, #tpu.memory_space<vmem>>, vector<1x128xf32>
    %22 = vector.broadcast %21 : vector<1x128xf32> to vector<8x128xf32>
    %23 = arith.addf %20, %22 : vector<8x128xf32>
    %cst_20 = arith.constant 0.000000e+00 : f32
    %24 = vector.broadcast %cst_20 : f32 to vector<8x128xf32>
    %25 = arith.maximumf %23, %24 : vector<8x128xf32>
    %c0_21 = arith.constant 0 : index
    %c0_22 = arith.constant 0 : index
    %26 = vector.load %arg10[%c0_21, %c0_22] : memref<128x128xf32, #tpu.memory_space<vmem>>, vector<128x128xf32>
    %cst_23 = arith.constant dense<0.000000e+00> : vector<8x128xf32>
    %27 = tpu.matmul %25, %26, %cst_23 {dimension_numbers = #tpu.dot_dimension_numbers<[1], [0], [0], [1], [0, 0, 1, 1], [], []>} : vector<8x128xf32>, vector<128x128xf32>, vector<8x128xf32> -> vector<8x128xf32>
    %c0_24 = arith.constant 0 : index
    %c0_25 = arith.constant 0 : index
    %28 = vector.load %arg11[%c0_24, %c0_25] : memref<1x128xf32, #tpu.memory_space<vmem>>, vector<1x128xf32>
    %29 = vector.broadcast %28 : vector<1x128xf32> to vector<8x128xf32>
    %30 = arith.addf %27, %29 : vector<8x128xf32>
    %c0_26 = arith.constant 0 : index
    %c0_27 = arith.constant 0 : index
    %31 = vector.load %arg12[%c0_26, %c0_27] : memref<8x128xf32, #tpu.memory_space<vmem>>, vector<8x128xf32>
    tpu.vector_store %arg12[%c0_26, %c0_27], %30 {strides = array<i32>} : memref<8x128xf32, #tpu.memory_space<vmem>>, vector<8x128xf32>,
    return
  }
  func.func @transform_0(%arg0: i32) -> (i32, i32) {
    %c0_i32 = arith.constant 0 : i32
    %c0_i32_0 = arith.constant 0 : i32
    return %arg0, %c0_i32 : i32, i32
  }
  func.func @transform_1(%arg0: i32) -> (i32, i32) {
    %c0_i32 = arith.constant 0 : i32
    %c0_i32_0 = arith.constant 0 : i32
    return %arg0, %c0_i32 : i32, i32
  }
  func.func @transform_2(%arg0: i32) -> (i32, i32) {
    %c0_i32 = arith.constant 0 : i32
    %c0_i32_0 = arith.constant 0 : i32
    %c0_i32_1 = arith.constant 0 : i32
    return %c0_i32, %c0_i32_0 : i32, i32
  }
  func.func @transform_3(%arg0: i32) -> (i32, i32) {
    %c0_i32 = arith.constant 0 : i32
    %c0_i32_0 = arith.constant 0 : i32
    %c0_i32_1 = arith.constant 0 : i32
    return %c0_i32, %c0_i32_0 : i32, i32
  }
  func.func @transform_4(%arg0: i32) -> (i32, i32) {
    %c0_i32 = arith.constant 0 : i32
    %c0_i32_0 = arith.constant 0 : i32
    %c0_i32_1 = arith.constant 0 : i32
    return %c0_i32, %c0_i32_0 : i32, i32
  }
  func.func @transform_5(%arg0: i32) -> (i32, i32) {
    %c0_i32 = arith.constant 0 : i32
    %c0_i32_0 = arith.constant 0 : i32
    %c0_i32_1 = arith.constant 0 : i32
    return %c0_i32, %c0_i32_0 : i32, i32
  }
  func.func @transform_6(%arg0: i32) -> (i32, i32) {
    %c0_i32 = arith.constant 0 : i32
    %c0_i32_0 = arith.constant 0 : i32
    %c0_i32_1 = arith.constant 0 : i32
    return %c0_i32, %c0_i32_0 : i32, i32
  }
  func.func @transform_7(%arg0: i32) -> (i32, i32) {
    %c0_i32 = arith.constant 0 : i32
    %c0_i32_0 = arith.constant 0 : i32
    %c0_i32_1 = arith.constant 0 : i32
    return %c0_i32, %c0_i32_0 : i32, i32
  }
  func.func @transform_8(%arg0: i32) -> (i32, i32) {
    %c0_i32 = arith.constant 0 : i32
    %c0_i32_0 = arith.constant 0 : i32
    %c0_i32_1 = arith.constant 0 : i32
    return %c0_i32, %c0_i32_0 : i32, i32
  }
  func.func @transform_9(%arg0: i32) -> (i32, i32) {
    %c0_i32 = arith.constant 0 : i32
    %c0_i32_0 = arith.constant 0 : i32
    %c0_i32_1 = arith.constant 0 : i32
    return %c0_i32, %c0_i32_0 : i32, i32
  }
  func.func @transform_10(%arg0: i32) -> (i32, i32) {
    %c0_i32 = arith.constant 0 : i32
    %c0_i32_0 = arith.constant 0 : i32
    %c0_i32_1 = arith.constant 0 : i32
    return %c0_i32, %c0_i32_0 : i32, i32
  }
  func.func @transform_11(%arg0: i32) -> (i32, i32) {
    %c0_i32 = arith.constant 0 : i32
    %c0_i32_0 = arith.constant 0 : i32
    return %arg0, %c0_i32 : i32, i32
  }
}

</mosaic_0001>

<llo_original>
// kernel: tpu_custom_call.1
$region0: #{tpu_custom_call.1}
  #allocation0 [shape = 'u32[]', space=smem, size = 0x4, offset = 0x4, fixed_abs, tag = 'smem constant byte address 0x4 - core index']
  #allocation1 [shape = 'u32[144,128]{1,0:T(1,128)}', space=vmem, size = 0x12000, scoped, tag = 'internal scratch']
  %s0 = inlined_call_operand.vmem [shape: f32[8,128], index: 0, kind: input, shape index: {}]
  %s1 = inlined_call_operand.vmem [shape: f32[8,1], index: 1, kind: input, shape index: {}]
  %s2 = inlined_call_operand.hbm [shape: f32[128,128], index: 2, kind: input, shape index: {}]
  %s3 = inlined_call_operand.vmem [shape: f32[1,128], index: 3, kind: input, shape index: {}]
  %s4 = inlined_call_operand.hbm [shape: f32[128,128], index: 4, kind: input, shape index: {}]
  %s5 = inlined_call_operand.vmem [shape: f32[1,128], index: 5, kind: input, shape index: {}]
  %s6 = inlined_call_operand.hbm [shape: f32[128,128], index: 6, kind: input, shape index: {}]
  %s7 = inlined_call_operand.vmem [shape: f32[1,128], index: 7, kind: input, shape index: {}]
  %s8 = inlined_call_operand.vmem [shape: f32[1,128], index: 8, kind: input, shape index: {}]
  %s9 = inlined_call_operand.hbm [shape: f32[128,128], index: 9, kind: input, shape index: {}]
  %s10 = inlined_call_operand.vmem [shape: f32[1,128], index: 10, kind: input, shape index: {}]
  %s11 = inlined_call_operand.hbm [shape: f32[8,128], index: 11, kind: output, shape index: {}]
  %s12 = sld [smem:[#allocation0]]
  $region70: #{tpu_custom_call.1} parent=0
    _
  %s14 = ssub.s32 1, %s12
  %s15 = scalar_select 0, %s14, %s12
  $region1: #{tpu_custom_call.1} parent=0
    #allocation2 [shape = 'u8[65536]{0}', space=vmem, size = 0x10000, scoped, tag = 'input window, operand 2, single buffered']
    #allocation3 [shape = 's32[1]{0}', space=sflag, size = 0x4, scoped, tag = 'scoped memory for tpu_custom_call.1']
    #allocation4 [shape = 's32[1]{0}', space=sflag, size = 0x4, scoped, tag = 'scoped memory for tpu_custom_call.1']
    #allocation5 [shape = 'u8[65536]{0}', space=vmem, size = 0x10000, scoped, tag = 'input window, operand 4, single buffered']
    #allocation6 [shape = 's32[1]{0}', space=sflag, size = 0x4, scoped, tag = 'scoped memory for tpu_custom_call.1']
    #allocation7 [shape = 'u8[65536]{0}', space=vmem, size = 0x10000, scoped, tag = 'input window, operand 6, single buffered']
    #allocation8 [shape = 'u8[65536]{0}', space=vmem, size = 0x10000, scoped, tag = 'input window, operand 9, single buffered']
    #allocation9 [shape = 's32[1]{0}', space=sflag, size = 0x4, scoped, tag = 'scoped memory for tpu_custom_call.1']
    #allocation10 [shape = 'u8[4096]{0}', space=vmem, size = 0x1000, scoped, tag = 'output window, operand 0, single buffered']
    %16 = vsyncpa [#allocation3], 0
    %17 = vsyncpa [#allocation6], 0
    %18 = vsyncpa [#allocation9], 0
    %19 = vsyncpa [#allocation4], 0
    // Predicated region
    $region2: #{tpu_custom_call.1} parent=1 // pred_check
      _
    $region3: #{tpu_custom_call.1} parent=1 // pred_check_branch
      %21 = sbr.rel (0) target = $region5
    $region4: #{tpu_custom_call.1} parent=1 // pred_region
      _
    $region5: #{tpu_custom_call.1} parent=1 // pred_fallthru
      _
    // Predicated region
    $region6: #{tpu_custom_call.1} parent=1 // pred_check
      _
    $region7: #{tpu_custom_call.1} parent=1 // pred_check_branch
      %23 = sbr.rel (0) target = $region9
    $region8: #{tpu_custom_call.1} parent=1 // pred_region
      _
    $region9: #{tpu_custom_call.1} parent=1 // pred_fallthru
      _
    // Predicated region
    $region10: #{tpu_custom_call.1} parent=1 // pred_check
      _
    $region11: #{tpu_custom_call.1} parent=1 // pred_check_branch
      %25 = sbr.rel (0) target = $region13
    $region12: #{tpu_custom_call.1} parent=1 // pred_region
      %s27 = ssub.s32 2048, 2048
      %28 = vsyncadd [#allocation3], %s27
      %s29 = sshll.u32 [#allocation2], 4
      %s30 = int_to_ptr.vmem [resolvable:$true] %s29
      %35 = dma.hbm_to_vmem [thread:$0]  %s2, 2048, %s30, [#allocation3], 128, 128, 8
    $region13: #{tpu_custom_call.1} parent=1 // pred_fallthru
      _
    // Predicated region
    $region14: #{tpu_custom_call.1} parent=1 // pred_check
      _
    $region15: #{tpu_custom_call.1} parent=1 // pred_check_branch
      %37 = sbr.rel (0) target = $region17
    $region16: #{tpu_custom_call.1} parent=1 // pred_region
      _
    $region17: #{tpu_custom_call.1} parent=1 // pred_fallthru
      _
    // Predicated region
    $region18: #{tpu_custom_call.1} parent=1 // pred_check
      _
    $region19: #{tpu_custom_call.1} parent=1 // pred_check_branch
      %39 = sbr.rel (0) target = $region21
    $region20: #{tpu_custom_call.1} parent=1 // pred_region
      %s41 = ssub.s32 2048, 2048
      %42 = vsyncadd [#allocation6], %s41
      %s43 = sshll.u32 [#allocation5], 4
      %s44 = int_to_ptr.vmem [resolvable:$true] %s43
      %49 = dma.hbm_to_vmem [thread:$0]  %s4, 2048, %s44, [#allocation6], 128, 128, 8
    $region21: #{tpu_custom_call.1} parent=1 // pred_fallthru
      _
    // Predicated region
    $region22: #{tpu_custom_call.1} parent=1 // pred_check
      _
    $region23: #{tpu_custom_call.1} parent=1 // pred_check_branch
      %51 = sbr.rel (0) target = $region25
    $region24: #{tpu_custom_call.1} parent=1 // pred_region
      _
    $region25: #{tpu_custom_call.1} parent=1 // pred_fallthru
      _
    // Predicated region
    $region26: #{tpu_custom_call.1} parent=1 // pred_check
      _
    $region27: #{tpu_custom_call.1} parent=1 // pred_check_branch
      %53 = sbr.rel (0) target = $region29
    $region28: #{tpu_custom_call.1} parent=1 // pred_region
      %s55 = ssub.s32 2048, 2048
      %56 = vsyncadd [#allocation6], %s55
      %s57 = sshll.u32 [#allocation7], 4
      %s58 = int_to_ptr.vmem [resolvable:$true] %s57
      %63 = dma.hbm_to_vmem [thread:$0]  %s6, 2048, %s58, [#allocation6], 128, 128, 8
    $region29: #{tpu_custom_call.1} parent=1 // pred_fallthru
      _
    // Predicated region
    $region30: #{tpu_custom_call.1} parent=1 // pred_check
      _
    $region31: #{tpu_custom_call.1} parent=1 // pred_check_branch
      %65 = sbr.rel (0) target = $region33
    $region32: #{tpu_custom_call.1} parent=1 // pred_region
      _
    $region33: #{tpu_custom_call.1} parent=1 // pred_fallthru
      _
    // Predicated region
    $region34: #{tpu_custom_call.1} parent=1 // pred_check
      _
    $region35: #{tpu_custom_call.1} parent=1 // pred_check_branch
      %67 = sbr.rel (0) target = $region37
    $region36: #{tpu_custom_call.1} parent=1 // pred_region
      _
    $region37: #{tpu_custom_call.1} parent=1 // pred_fallthru
      _
    // Predicated region
    $region38: #{tpu_custom_call.1} parent=1 // pred_check
      _
    $region39: #{tpu_custom_call.1} parent=1 // pred_check_branch
      %69 = sbr.rel (0) target = $region41
    $region40: #{tpu_custom_call.1} parent=1 // pred_region
      %s71 = ssub.s32 2048, 2048
      %72 = vsyncadd [#allocation9], %s71
      %s73 = sshll.u32 [#allocation8], 4
      %s74 = int_to_ptr.vmem [resolvable:$true] %s73
      %79 = dma.hbm_to_vmem [thread:$0]  %s9, 2048, %s74, [#allocation9], 128, 128, 8
    $region41: #{tpu_custom_call.1} parent=1 // pred_fallthru
      _
    // Predicated region
    $region42: #{tpu_custom_call.1} parent=1 // pred_check
      _
    $region43: #{tpu_custom_call.1} parent=1 // pred_check_branch
      %81 = sbr.rel (0) target = $region45
    $region44: #{tpu_custom_call.1} parent=1 // pred_region
      _
    $region45: #{tpu_custom_call.1} parent=1 // pred_fallthru
      _
    // Predicated region
    $region46: #{tpu_custom_call.1} parent=1 // pred_check
      _
    $region47: #{tpu_custom_call.1} parent=1 // pred_check_branch
      %83 = sbr.rel (0) target = $region49
    $region48: #{tpu_custom_call.1} parent=1 // pred_region
      %84 = dma.done [#allocation3], 2048
    $region49: #{tpu_custom_call.1} parent=1 // pred_fallthru
      _
    // Predicated region
    $region50: #{tpu_custom_call.1} parent=1 // pred_check
      _
    $region51: #{tpu_custom_call.1} parent=1 // pred_check_branch
      %86 = sbr.rel (0) target = $region53
    $region52: #{tpu_custom_call.1} parent=1 // pred_region
      %87 = dma.done [#allocation6], 2048
    $region53: #{tpu_custom_call.1} parent=1 // pred_fallthru
      _
    // Predicated region
    $region54: #{tpu_custom_call.1} parent=1 // pred_check
      _
    $region55: #{tpu_custom_call.1} parent=1 // pred_check_branch
      %89 = sbr.rel (0) target = $region57
    $region56: #{tpu_custom_call.1} parent=1 // pred_region
      %90 = dma.done [#allocation6], 2048
    $region57: #{tpu_custom_call.1} parent=1 // pred_fallthru
      _
    // Predicated region
    $region58: #{tpu_custom_call.1} parent=1 // pred_check
      _
    $region59: #{tpu_custom_call.1} parent=1 // pred_check_branch
      %92 = sbr.rel (0) target = $region61
    $region60: #{tpu_custom_call.1} parent=1 // pred_region
      %93 = dma.done [#allocation9], 2048
    $region61: #{tpu_custom_call.1} parent=1 // pred_fallthru
      _
    %v94 = vld [vmem:[%s0] sm:$0xff]
    %v95 = vld [vmem:[#allocation2] sm:$0xff]
    %v96 = vld [vmem:[#allocation2 + $0x8] sm:$0xff]
    %v97 = vld [vmem:[#allocation2 + $0x10] sm:$0xff]
    %v98 = vld [vmem:[#allocation2 + $0x18] sm:$0xff]
    %v99 = vld [vmem:[#allocation2 + $0x20] sm:$0xff]
    %v100 = vld [vmem:[#allocation2 + $0x28] sm:$0xff]
    %v101 = vld [vmem:[#allocation2 + $0x30] sm:$0xff]
    %v102 = vld [vmem:[#allocation2 + $0x38] sm:$0xff]
    %v103 = vld [vmem:[#allocation2 + $0x40] sm:$0xff]
    %v104 = vld [vmem:[#allocation2 + $0x48] sm:$0xff]
    %v105 = vld [vmem:[#allocation2 + $0x50] sm:$0xff]
    %v106 = vld [vmem:[#allocation2 + $0x58] sm:$0xff]
    %v107 = vld [vmem:[#allocation2 + $0x60] sm:$0xff]
    %v108 = vld [vmem:[#allocation2 + $0x68] sm:$0xff]
    %v109 = vld [vmem:[#allocation2 + $0x70] sm:$0xff]
    %v110 = vld [vmem:[#allocation2 + $0x78] sm:$0xff]
    %v111 = vld [vmem:[%s3] sm:$0x1]
    %v113 = vlaneseq
    %v114 = vshrl.u32 %v113, 7
    %v115 = vsub.s32 0, %v114
    %v116 = vrot.slane %v111, %v115
    %118 = vmatprep.subr.mxu0 0.0
    %119 = vmatpush1.msra.mxu0 %v95
    %120 = vmatprep.subr.mxu0 0.0
    %121 = vmatpush1.msra.mxu0 %v96
    %122 = vmatprep.subr.mxu0 0.0
    %123 = vmatpush1.msra.mxu0 %v97
    %124 = vmatprep.subr.mxu0 0.0
    %125 = vmatpush1.msra.mxu0 %v98
    %126 = vmatprep.subr.mxu0 0.0
    %127 = vmatpush1.msra.mxu0 %v99
    %128 = vmatprep.subr.mxu0 0.0
    %129 = vmatpush1.msra.mxu0 %v100
    %130 = vmatprep.subr.mxu0 0.0
    %131 = vmatpush1.msra.mxu0 %v101
    %132 = vmatprep.subr.mxu0 0.0
    %133 = vmatpush1.msra.mxu0 %v102
    %134 = vmatprep.subr.mxu0 0.0
    %135 = vmatpush1.msra.mxu0 %v103
    %136 = vmatprep.subr.mxu0 0.0
    %137 = vmatpush1.msra.mxu0 %v104
    %138 = vmatprep.subr.mxu0 0.0
    %139 = vmatpush1.msra.mxu0 %v105
    %140 = vmatprep.subr.mxu0 0.0
    %141 = vmatpush1.msra.mxu0 %v106
    %142 = vmatprep.subr.mxu0 0.0
    %143 = vmatpush1.msra.mxu0 %v107
    %144 = vmatprep.subr.mxu0 0.0
    %145 = vmatpush1.msra.mxu0 %v108
    %146 = vmatprep.subr.mxu0 0.0
    %147 = vmatpush1.msra.mxu0 %v109
    %148 = vmatprep.subr.mxu0 0.0
    %149 = vmatpush1.msra.mxu0 %v110
    %150 = vmatprep.subr.mxu0 0.0
    %151 = vmatpush1.msra.mxu0 0.0
    %152 = vmatprep.subr.mxu0 0.0
    %153 = vmatpush1.msra.mxu0 0.0
    %154 = vmatprep.subr.mxu0 0.0
    %155 = vmatpush1.msra.mxu0 0.0
    %156 = vmatprep.subr.mxu0 0.0
    %157 = vmatpush1.msra.mxu0 0.0
    %158 = vmatprep.subr.mxu0 0.0
    %159 = vmatpush1.msra.mxu0 0.0
    %160 = vmatprep.subr.mxu0 0.0
    %161 = vmatpush1.msra.mxu0 0.0
    %162 = vmatprep.subr.mxu0 0.0
    %163 = vmatpush1.msra.mxu0 0.0
    %164 = vmatprep.subr.mxu0 0.0
    %165 = vmatpush1.msra.mxu0 0.0
    %166 = vmatprep.subr.mxu0 0.0
    %167 = vmatpush1.msra.mxu0 0.0
    %168 = vmatprep.subr.mxu0 0.0
    %169 = vmatpush1.msra.mxu0 0.0
    %170 = vmatprep.subr.mxu0 0.0
    %171 = vmatpush1.msra.mxu0 0.0
    %172 = vmatprep.subr.mxu0 0.0
    %173 = vmatpush1.msra.mxu0 0.0
    %174 = vmatprep.subr.mxu0 0.0
    %175 = vmatpush1.msra.mxu0 0.0
    %176 = vmatprep.subr.mxu0 0.0
    %177 = vmatpush1.msra.mxu0 0.0
    %178 = vmatprep.subr.mxu0 0.0
    %179 = vmatpush1.msra.mxu0 0.0
    %180 = vmatprep.subr.mxu0 0.0
    %181 = vmatpush1.msra.mxu0 0.0
    %182 = vmatprep.mubr.f32.mxu0 0.0
    %183 = vmatmul.mubr.f32.gmra.mrb[0].mxu0 %v94
    %v184 = vpop.f32.mrb[0].mxu0
    %v185 = vadd.f32 %v116, %v184
    %v186 = vpop.f32.mrb[0].mxu0
    %187 = vdwg.mxu0
    %v188 = vmax.f32 %v185, 0.0
    %v189 = vld [vmem:[#allocation5] sm:$0xff]
    %v190 = vld [vmem:[#allocation5 + $0x8] sm:$0xff]
    %v191 = vld [vmem:[#allocation5 + $0x10] sm:$0xff]
    %v192 = vld [vmem:[#allocation5 + $0x18] sm:$0xff]
    %v193 = vld [vmem:[#allocation5 + $0x20] sm:$0xff]
    %v194 = vld [vmem:[#allocation5 + $0x28] sm:$0xff]
    %v195 = vld [vmem:[#allocation5 + $0x30] sm:$0xff]
    %v196 = vld [vmem:[#allocation5 + $0x38] sm:$0xff]
    %v197 = vld [vmem:[#allocation5 + $0x40] sm:$0xff]
    %v198 = vld [vmem:[#allocation5 + $0x48] sm:$0xff]
    %v199 = vld [vmem:[#allocation5 + $0x50] sm:$0xff]
    %v200 = vld [vmem:[#allocation5 + $0x58] sm:$0xff]
    %v201 = vld [vmem:[#allocation5 + $0x60] sm:$0xff]
    %v202 = vld [vmem:[#allocation5 + $0x68] sm:$0xff]
    %v203 = vld [vmem:[#allocation5 + $0x70] sm:$0xff]
    %v204 = vld [vmem:[#allocation5 + $0x78] sm:$0xff]
    %v205 = vld [vmem:[%s5] sm:$0x1]
    %v207 = vlaneseq
    %v208 = vshrl.u32 %v207, 7
    %v209 = vsub.s32 0, %v208
    %v210 = vrot.slane %v205, %v209
    %212 = vmatprep.subr.mxu0 0.0
    %213 = vmatpush1.msra.mxu0 %v189
    %214 = vmatprep.subr.mxu0 0.0
    %215 = vmatpush1.msra.mxu0 %v190
    %216 = vmatprep.subr.mxu0 0.0
    %217 = vmatpush1.msra.mxu0 %v191
    %218 = vmatprep.subr.mxu0 0.0
    %219 = vmatpush1.msra.mxu0 %v192
    %220 = vmatprep.subr.mxu0 0.0
    %221 = vmatpush1.msra.mxu0 %v193
    %222 = vmatprep.subr.mxu0 0.0
    %223 = vmatpush1.msra.mxu0 %v194
    %224 = vmatprep.subr.mxu0 0.0
    %225 = vmatpush1.msra.mxu0 %v195
    %226 = vmatprep.subr.mxu0 0.0
    %227 = vmatpush1.msra.mxu0 %v196
    %228 = vmatprep.subr.mxu0 0.0
    %229 = vmatpush1.msra.mxu0 %v197
    %230 = vmatprep.subr.mxu0 0.0
    %231 = vmatpush1.msra.mxu0 %v198
    %232 = vmatprep.subr.mxu0 0.0
    %233 = vmatpush1.msra.mxu0 %v199
    %234 = vmatprep.subr.mxu0 0.0
    %235 = vmatpush1.msra.mxu0 %v200
    %236 = vmatprep.subr.mxu0 0.0
    %237 = vmatpush1.msra.mxu0 %v201
    %238 = vmatprep.subr.mxu0 0.0
    %239 = vmatpush1.msra.mxu0 %v202
    %240 = vmatprep.subr.mxu0 0.0
    %241 = vmatpush1.msra.mxu0 %v203
    %242 = vmatprep.subr.mxu0 0.0
    %243 = vmatpush1.msra.mxu0 %v204
    %244 = vmatprep.subr.mxu0 0.0
    %245 = vmatpush1.msra.mxu0 0.0
    %246 = vmatprep.subr.mxu0 0.0
    %247 = vmatpush1.msra.mxu0 0.0
    %248 = vmatprep.subr.mxu0 0.0
    %249 = vmatpush1.msra.mxu0 0.0
    %250 = vmatprep.subr.mxu0 0.0
    %251 = vmatpush1.msra.mxu0 0.0
    %252 = vmatprep.subr.mxu0 0.0
    %253 = vmatpush1.msra.mxu0 0.0
    %254 = vmatprep.subr.mxu0 0.0
    %255 = vmatpush1.msra.mxu0 0.0
    %256 = vmatprep.subr.mxu0 0.0
    %257 = vmatpush1.msra.mxu0 0.0
    %258 = vmatprep.subr.mxu0 0.0
    %259 = vmatpush1.msra.mxu0 0.0
    %260 = vmatprep.subr.mxu0 0.0
    %261 = vmatpush1.msra.mxu0 0.0
    %262 = vmatprep.subr.mxu0 0.0
    %263 = vmatpush1.msra.mxu0 0.0
    %264 = vmatprep.subr.mxu0 0.0
    %265 = vmatpush1.msra.mxu0 0.0
    %266 = vmatprep.subr.mxu0 0.0
    %267 = vmatpush1.msra.mxu0 0.0
    %268 = vmatprep.subr.mxu0 0.0
    %269 = vmatpush1.msra.mxu0 0.0
    %270 = vmatprep.subr.mxu0 0.0
    %271 = vmatpush1.msra.mxu0 0.0
    %272 = vmatprep.subr.mxu0 0.0
    %273 = vmatpush1.msra.mxu0 0.0
    %274 = vmatprep.subr.mxu0 0.0
    %275 = vmatpush1.msra.mxu0 0.0
    %276 = vmatprep.mubr.f32.mxu0 0.0
    %277 = vmatmul.mubr.f32.gmra.mrb[0].mxu0 %v188
    %v278 = vpop.f32.mrb[0].mxu0
    %v279 = vadd.f32 %v210, %v278
    %v280 = vpop.f32.mrb[0].mxu0
    %281 = vdwg.mxu0
    %v282 = vld [vmem:[#allocation7] sm:$0xff]
    %v283 = vld [vmem:[#allocation7 + $0x8] sm:$0xff]
    %v284 = vld [vmem:[#allocation7 + $0x10] sm:$0xff]
    %v285 = vld [vmem:[#allocation7 + $0x18] sm:$0xff]
    %v286 = vld [vmem:[#allocation7 + $0x20] sm:$0xff]
    %v287 = vld [vmem:[#allocation7 + $0x28] sm:$0xff]
    %v288 = vld [vmem:[#allocation7 + $0x30] sm:$0xff]
    %v289 = vld [vmem:[#allocation7 + $0x38] sm:$0xff]
    %v290 = vld [vmem:[#allocation7 + $0x40] sm:$0xff]
    %v291 = vld [vmem:[#allocation7 + $0x48] sm:$0xff]
    %v292 = vld [vmem:[#allocation7 + $0x50] sm:$0xff]
    %v293 = vld [vmem:[#allocation7 + $0x58] sm:$0xff]
    %v294 = vld [vmem:[#allocation7 + $0x60] sm:$0xff]
    %v295 = vld [vmem:[#allocation7 + $0x68] sm:$0xff]
    %v296 = vld [vmem:[#allocation7 + $0x70] sm:$0xff]
    %v297 = vld [vmem:[#allocation7 + $0x78] sm:$0xff]
    %v298 = vld [vmem:[%s1] sm:$0xff]
    %v299 = vld [vmem:[%s7] sm:$0x1]
    %301 = vset.pattern.permute.xlu0 0
    %302 = vperm.xlu0 %301, %v298
    %v303 = vpop.permute.xlu0 %302
    %v306 = vlaneseq
    %v307 = vshrl.u32 %v306, 7
    %v308 = vsub.s32 0, %v307
    %v309 = vrot.slane %v299, %v308
    %v311 = vmul.f32 %v303, %v309
    %312 = vmatprep.subr.mxu0 0.0
    %313 = vmatpush1.msra.mxu0 %v282
    %314 = vmatprep.subr.mxu0 0.0
    %315 = vmatpush1.msra.mxu0 %v283
    %316 = vmatprep.subr.mxu0 0.0
    %317 = vmatpush1.msra.mxu0 %v284
    %318 = vmatprep.subr.mxu0 0.0
    %319 = vmatpush1.msra.mxu0 %v285
    %320 = vmatprep.subr.mxu0 0.0
    %321 = vmatpush1.msra.mxu0 %v286
    %322 = vmatprep.subr.mxu0 0.0
    %323 = vmatpush1.msra.mxu0 %v287
    %324 = vmatprep.subr.mxu0 0.0
    %325 = vmatpush1.msra.mxu0 %v288
    %326 = vmatprep.subr.mxu0 0.0
    %327 = vmatpush1.msra.mxu0 %v289
    %328 = vmatprep.subr.mxu0 0.0
    %329 = vmatpush1.msra.mxu0 %v290
    %330 = vmatprep.subr.mxu0 0.0
    %331 = vmatpush1.msra.mxu0 %v291
    %332 = vmatprep.subr.mxu0 0.0
    %333 = vmatpush1.msra.mxu0 %v292
    %334 = vmatprep.subr.mxu0 0.0
    %335 = vmatpush1.msra.mxu0 %v293
    %336 = vmatprep.subr.mxu0 0.0
    %337 = vmatpush1.msra.mxu0 %v294
    %338 = vmatprep.subr.mxu0 0.0
    %339 = vmatpush1.msra.mxu0 %v295
    %340 = vmatprep.subr.mxu0 0.0
    %341 = vmatpush1.msra.mxu0 %v296
    %342 = vmatprep.subr.mxu0 0.0
    %343 = vmatpush1.msra.mxu0 %v297
    %344 = vmatprep.subr.mxu0 0.0
    %345 = vmatpush1.msra.mxu0 0.0
    %346 = vmatprep.subr.mxu0 0.0
    %347 = vmatpush1.msra.mxu0 0.0
    %348 = vmatprep.subr.mxu0 0.0
    %349 = vmatpush1.msra.mxu0 0.0
    %350 = vmatprep.subr.mxu0 0.0
    %351 = vmatpush1.msra.mxu0 0.0
    %352 = vmatprep.subr.mxu0 0.0
    %353 = vmatpush1.msra.mxu0 0.0
    %354 = vmatprep.subr.mxu0 0.0
    %355 = vmatpush1.msra.mxu0 0.0
    %356 = vmatprep.subr.mxu0 0.0
    %357 = vmatpush1.msra.mxu0 0.0
    %358 = vmatprep.subr.mxu0 0.0
    %359 = vmatpush1.msra.mxu0 0.0
    %360 = vmatprep.subr.mxu0 0.0
    %361 = vmatpush1.msra.mxu0 0.0
    %362 = vmatprep.subr.mxu0 0.0
    %363 = vmatpush1.msra.mxu0 0.0
    %364 = vmatprep.subr.mxu0 0.0
    %365 = vmatpush1.msra.mxu0 0.0
    %366 = vmatprep.subr.mxu0 0.0
    %367 = vmatpush1.msra.mxu0 0.0
    %368 = vmatprep.subr.mxu0 0.0
    %369 = vmatpush1.msra.mxu0 0.0
    %370 = vmatprep.subr.mxu0 0.0
    %371 = vmatpush1.msra.mxu0 0.0
    %372 = vmatprep.subr.mxu0 0.0
    %373 = vmatpush1.msra.mxu0 0.0
    %374 = vmatprep.subr.mxu0 0.0
    %375 = vmatpush1.msra.mxu0 0.0
    %376 = vmatprep.mubr.f32.mxu0 0.0
    %377 = vmatmul.mubr.f32.gmra.mrb[0].mxu0 %v279
    %v378 = vpop.f32.mrb[0].mxu0
    %v379 = vadd.f32 %v311, %v378
    %v380 = vpop.f32.mrb[0].mxu0
    %381 = vdwg.mxu0
    %v382 = vld [vmem:[%s8] sm:$0x1]
    %v384 = vlaneseq
    %v385 = vshrl.u32 %v384, 7
    %v386 = vsub.s32 0, %v385
    %v387 = vrot.slane %v382, %v386
    %v389 = vadd.f32 %v379, %v387
    %v390 = vmax.f32 %v389, 0.0
    %v391 = vld [vmem:[#allocation8] sm:$0xff]
    %v392 = vld [vmem:[#allocation8 + $0x8] sm:$0xff]
    %v393 = vld [vmem:[#allocation8 + $0x10] sm:$0xff]
    %v394 = vld [vmem:[#allocation8 + $0x18] sm:$0xff]
    %v395 = vld [vmem:[#allocation8 + $0x20] sm:$0xff]
    %v396 = vld [vmem:[#allocation8 + $0x28] sm:$0xff]
    %v397 = vld [vmem:[#allocation8 + $0x30] sm:$0xff]
    %v398 = vld [vmem:[#allocation8 + $0x38] sm:$0xff]
    %v399 = vld [vmem:[#allocation8 + $0x40] sm:$0xff]
    %v400 = vld [vmem:[#allocation8 + $0x48] sm:$0xff]
    %v401 = vld [vmem:[#allocation8 + $0x50] sm:$0xff]
    %v402 = vld [vmem:[#allocation8 + $0x58] sm:$0xff]
    %v403 = vld [vmem:[#allocation8 + $0x60] sm:$0xff]
    %v404 = vld [vmem:[#allocation8 + $0x68] sm:$0xff]
    %v405 = vld [vmem:[#allocation8 + $0x70] sm:$0xff]
    %v406 = vld [vmem:[#allocation8 + $0x78] sm:$0xff]
    %v407 = vld [vmem:[%s10] sm:$0x1]
    %v409 = vlaneseq
    %v410 = vshrl.u32 %v409, 7
    %v411 = vsub.s32 0, %v410
    %v412 = vrot.slane %v407, %v411
    %414 = vmatprep.subr.mxu0 0.0
    %415 = vmatpush1.msra.mxu0 %v391
    %416 = vmatprep.subr.mxu0 0.0
    %417 = vmatpush1.msra.mxu0 %v392
    %418 = vmatprep.subr.mxu0 0.0
    %419 = vmatpush1.msra.mxu0 %v393
    %420 = vmatprep.subr.mxu0 0.0
    %421 = vmatpush1.msra.mxu0 %v394
    %422 = vmatprep.subr.mxu0 0.0
    %423 = vmatpush1.msra.mxu0 %v395
    %424 = vmatprep.subr.mxu0 0.0
    %425 = vmatpush1.msra.mxu0 %v396
    %426 = vmatprep.subr.mxu0 0.0
    %427 = vmatpush1.msra.mxu0 %v397
    %428 = vmatprep.subr.mxu0 0.0
    %429 = vmatpush1.msra.mxu0 %v398
    %430 = vmatprep.subr.mxu0 0.0
    %431 = vmatpush1.msra.mxu0 %v399
    %432 = vmatprep.subr.mxu0 0.0
    %433 = vmatpush1.msra.mxu0 %v400
    %434 = vmatprep.subr.mxu0 0.0
    %435 = vmatpush1.msra.mxu0 %v401
    %436 = vmatprep.subr.mxu0 0.0
    %437 = vmatpush1.msra.mxu0 %v402
    %438 = vmatprep.subr.mxu0 0.0
    %439 = vmatpush1.msra.mxu0 %v403
    %440 = vmatprep.subr.mxu0 0.0
    %441 = vmatpush1.msra.mxu0 %v404
    %442 = vmatprep.subr.mxu0 0.0
    %443 = vmatpush1.msra.mxu0 %v405
    %444 = vmatprep.subr.mxu0 0.0
    %445 = vmatpush1.msra.mxu0 %v406
    %446 = vmatprep.subr.mxu0 0.0
    %447 = vmatpush1.msra.mxu0 0.0
    %448 = vmatprep.subr.mxu0 0.0
    %449 = vmatpush1.msra.mxu0 0.0
    %450 = vmatprep.subr.mxu0 0.0
    %451 = vmatpush1.msra.mxu0 0.0
    %452 = vmatprep.subr.mxu0 0.0
    %453 = vmatpush1.msra.mxu0 0.0
    %454 = vmatprep.subr.mxu0 0.0
    %455 = vmatpush1.msra.mxu0 0.0
    %456 = vmatprep.subr.mxu0 0.0
    %457 = vmatpush1.msra.mxu0 0.0
    %458 = vmatprep.subr.mxu0 0.0
    %459 = vmatpush1.msra.mxu0 0.0
    %460 = vmatprep.subr.mxu0 0.0
    %461 = vmatpush1.msra.mxu0 0.0
    %462 = vmatprep.subr.mxu0 0.0
    %463 = vmatpush1.msra.mxu0 0.0
    %464 = vmatprep.subr.mxu0 0.0
    %465 = vmatpush1.msra.mxu0 0.0
    %466 = vmatprep.subr.mxu0 0.0
    %467 = vmatpush1.msra.mxu0 0.0
    %468 = vmatprep.subr.mxu0 0.0
    %469 = vmatpush1.msra.mxu0 0.0
    %470 = vmatprep.subr.mxu0 0.0
    %471 = vmatpush1.msra.mxu0 0.0
    %472 = vmatprep.subr.mxu0 0.0
    %473 = vmatpush1.msra.mxu0 0.0
    %474 = vmatprep.subr.mxu0 0.0
    %475 = vmatpush1.msra.mxu0 0.0
    %476 = vmatprep.subr.mxu0 0.0
    %477 = vmatpush1.msra.mxu0 0.0
    %478 = vmatprep.mubr.f32.mxu0 0.0
    %479 = vmatmul.mubr.f32.gmra.mrb[0].mxu0 %v390
    %v480 = vpop.f32.mrb[0].mxu0
    %v481 = vadd.f32 %v412, %v480
    %v482 = vpop.f32.mrb[0].mxu0
    %483 = vdwg.mxu0
    %484 = vst [vmem:[#allocation10] sm:$0xff] %v481
    // Predicated region
    $region62: #{tpu_custom_call.1} parent=1 // pred_check
      _
    $region63: #{tpu_custom_call.1} parent=1 // pred_check_branch
      %486 = sbr.rel (0) target = $region65
    $region64: #{tpu_custom_call.1} parent=1 // pred_region
      %s488 = ssub.s32 128, 128
      %489 = vsyncadd [#allocation4], %s488
      %s491 = sshll.u32 [#allocation10], 4
      %s492 = int_to_ptr.vmem [resolvable:$true] %s491
      %494 = dma.vmem_to_hbm [thread:$0]  %s492, 128, %s11, [#allocation4]
    $region65: #{tpu_custom_call.1} parent=1 // pred_fallthru
      _
    // Predicated region
    $region66: #{tpu_custom_call.1} parent=1 // pred_check
      _
    $region67: #{tpu_custom_call.1} parent=1 // pred_check_branch
      %496 = sbr.rel (0) target = $region69
    $region68: #{tpu_custom_call.1} parent=1 // pred_region
      %497 = dma.done [#allocation4], 128
    $region69: #{tpu_custom_call.1} parent=1 // pred_fallthru
      _
    %498 = vsyncpa [#allocation3], 1
    %499 = vsyncpa [#allocation6], 1
    %500 = vsyncpa [#allocation9], 1
    %501 = vsyncpa [#allocation4], 1

</llo_original>
